<compile_context>
chip_gen: v5e
topology: v5e:2x2
jax: 0.10.0
libtpu: 0.0.40
codegen_flags: <defaults>
</compile_context>

<pallas_src>
import functools

import jax
import jax.numpy as jnp
from jax.experimental import pallas as pl
from jax.experimental.pallas import tpu as pltpu


# --------------------------------------------------------------------------
# Pallas kernel: TB images per grid step.
# --------------------------------------------------------------------------
def backbone_kernel(p_ref, w12_ref, w3_ref, b3_ref, wfc_ref, bfc_ref, o_ref,
                    *, TB, P_pad):
    bf16 = jnp.bfloat16
    # Fused [3x3 stride-2 conv] @ [1x1 conv + BN1] as one im2col matmul; the
    # combined bias (conv_b @ W2 + b2) rides the ones column of the patches.
    # (TB*P_pad, K_pad) @ (K_pad, 64) -> f32, then ReLU.
    h1 = jnp.maximum(
        jnp.dot(p_ref[...], w12_ref[...],
                preferred_element_type=jnp.float32), 0.0)
    # Second 1x1 conv (+ folded BN2) + ReLU.
    h2 = jnp.maximum(
        jnp.dot(h1.astype(bf16), w3_ref[...],
                preferred_element_type=jnp.float32) + b3_ref[...], 0.0)
    # Global average pool: sum the P_pad spatial rows of each image via a
    # sublane reduction (padded rows' constant relu(b3) contribution is
    # pre-subtracted from the FC bias; the 1/P scale is folded into wfc).
    g = h2.reshape(TB, P_pad, 64).sum(axis=1)          # (TB, 64) f32
    # fc: Linear(64, 512) + ReLU (+ Dropout identity in eval).
    out = jnp.maximum(
        jnp.dot(g.astype(bf16), wfc_ref[...],
                preferred_element_type=jnp.float32) + bfc_ref[...], 0.0)
    o_ref[...] = out.astype(o_ref.dtype)


# --------------------------------------------------------------------------
# Helpers
# --------------------------------------------------------------------------
def _round_up(x, m):
    return (x + m - 1) // m * m


def _pick_images_per_step(B, P_pad, K_pad):
    """Images per grid step (TB).

    - TB must divide B; the 2-D (TB, 512) output block additionally needs
      TB % 8 == 0 or TB == B to satisfy the (8, 128) block-tiling rule.
    - Aim for several hundred rows (TB * P_pad) in the matmul M dimension to
      amortize the ~0.35us per-grid-step overhead and fill the MXU, while
      keeping the double-buffered bf16 patch tile far below scoped-VMEM
      limits (16 MiB default on v5e, 32 MiB on v6e/v7x; v7x has only 64 MiB
      physical).
    - The 4096-row cap also keeps the grid length > 1 for larger batches so
      both v7x TensorCores get work.
    """
    budget_bytes = 8 << 20
    cands = [d for d in range(1, B + 1)
             if B % d == 0 and (d % 8 == 0 or d == B)]
    fitting = [d for d in cands
               if 2 * d * P_pad * K_pad * 2 <= budget_bytes  # 2 bufs, bf16
               and d * P_pad <= 4096]
    return max(fitting) if fitting else min(cands)


# --------------------------------------------------------------------------
# Wrapper: im2col + parameter folding (glue) + pallas_call
# --------------------------------------------------------------------------
def multi_view_backbone(x, params):
    """x: (B, C, H, W) float32 -> (B, 512) float32."""
    B, C, H, W = x.shape
    Ho = (H + 2 - 3) // 2 + 1
    Wo = (W + 2 - 3) // 2 + 1
    P = Ho * Wo
    P_pad = _round_up(P, 8)            # per-image rows, 8-aligned sublanes
    K = C * 9
    K_pad = _round_up(K + 1, 8)        # +1 ones column for the folded biases
    TB = _pick_images_per_step(B, P_pad, K_pad)

    # ---- im2col (glue): patches[b, p, c*9 + kh*3 + kw] ----
    x_pad = jnp.pad(x, ((0, 0), (0, 0), (1, 1), (1, 1)))
    cols = []
    for kh in range(3):
        for kw in range(3):
            cols.append(x_pad[:, :, kh:kh + 2 * Ho:2, kw:kw + 2 * Wo:2])
    patches = jnp.stack(cols, axis=2).reshape(B, C * 9, Ho, Wo)
    patches = jnp.transpose(patches, (0, 2, 3, 1)).reshape(B, P, K)
    # ones column (bias fold) + pad rows/cols, then flatten & cast bf16
    patches = jnp.concatenate(
        [patches, jnp.ones((B, P, 1), patches.dtype)], axis=-1)
    patches = jnp.pad(patches, ((0, 0), (0, P_pad - P), (0, K_pad - (K + 1))))
    patches = patches.reshape(B * P_pad, K_pad).astype(jnp.bfloat16)

    # ---- fold parameters into matmul form (glue, all in f32) ----
    eps = 1e-5
    w1 = params["conv_w"].reshape(64, K).T                      # (K, 64)
    b1 = params["conv_b"]                                       # (64,)

    def fold_bn(conv_w, conv_b, gamma, beta, mean, var):
        scale = gamma / jnp.sqrt(var + eps)                     # (64,)
        w_mat = conv_w.reshape(64, 64).T * scale[None, :]       # (in, out)
        b_row = scale * (conv_b - mean) + beta                  # (64,)
        return w_mat, b_row

    w2, b2 = fold_bn(params["lfc1_w"], params["lfc1_b"],
                     params["bn1_g"], params["bn1_b"],
                     params["bn1_m"], params["bn1_v"])
    w3, b3 = fold_bn(params["lfc2_w"], params["lfc2_b"],
                     params["bn2_g"], params["bn2_b"],
                     params["bn2_m"], params["bn2_v"])

    # No ReLU between conv and lfc1 => fold W1 @ W2 (and the biases) into one.
    w12 = w1 @ w2                                               # (K, 64)
    b12 = b1 @ w2 + b2                                          # (64,)
    w12_aug = jnp.concatenate([w12, b12[None, :]], axis=0)      # (K+1, 64)
    w12_mat = jnp.pad(
        w12_aug, ((0, K_pad - (K + 1)), (0, 0))).astype(jnp.bfloat16)

    w3_mat = w3.astype(jnp.bfloat16)                            # (64, 64)
    b3_row = b3.reshape(1, 64)                                  # f32

    # 1/P folded into the FC weight; the constant relu(b3) contribution of
    # the (P_pad - P) zero-padded rows is subtracted from the FC bias.
    wfc_mat = (params["fc_w"].T * (1.0 / P)).astype(jnp.bfloat16)  # (64, 512)
    pad_corr = ((P_pad - P) / P) * (jnp.maximum(b3, 0.0) @ params["fc_w"].T)
    bfc_row = (params["fc_b"] - pad_corr).reshape(1, 512)          # f32

    # ---- pallas_call ----
    grid_spec = pltpu.PrefetchScalarGridSpec(
        num_scalar_prefetch=0,
        grid=(B // TB,),
        in_specs=[
            pl.BlockSpec((TB * P_pad, K_pad), lambda b: (b, 0)),  # streamed
            pl.BlockSpec((K_pad, 64), lambda b: (0, 0)),          # resident
            pl.BlockSpec((64, 64), lambda b: (0, 0)),
            pl.BlockSpec((1, 64), lambda b: (0, 0)),
            pl.BlockSpec((64, 512), lambda b: (0, 0)),
            pl.BlockSpec((1, 512), lambda b: (0, 0)),
        ],
        out_specs=pl.BlockSpec((TB, 512), lambda b: (b, 0)),
    )

    kernel = functools.partial(backbone_kernel, TB=TB, P_pad=P_pad)

    out = pl.pallas_call(
        kernel,
        out_shape=jax.ShapeDtypeStruct((B, 512), jnp.float32),
        grid_spec=grid_spec,
        compiler_params=pltpu.CompilerParams(
            dimension_semantics=("parallel",),
            vmem_limit_bytes=32 * 1024 * 1024),
    )(patches, w12_mat, w3_mat, b3_row, wfc_mat, bfc_row)

    return out


# --------------------------------------------------------------------------
# Pure-JAX f32 reference (for sanity check)
# --------------------------------------------------------------------------
def reference(x, params):
    eps = 1e-5
    y = jax.lax.conv_general_dilated(
        x, params["conv_w"], (2, 2), ((1, 1), (1, 1)),
        dimension_numbers=("NCHW", "OIHW", "NCHW"))
    y = y + params["conv_b"][None, :, None, None]

    def conv1x1_bn_relu(z, w, b, g, be, m, v):
        z = jax.lax.conv_general_dilated(
            z, w, (1, 1), ((0, 0), (0, 0)),
            dimension_numbers=("NCHW", "OIHW", "NCHW"))
        z = z + b[None, :, None, None]
        z = (z - m[None, :, None, None]) / jnp.sqrt(v + eps)[None, :, None, None]
        z = z * g[None, :, None, None] + be[None, :, None, None]
        return jnp.maximum(z, 0.0)

    y = conv1x1_bn_relu(y, params["lfc1_w"], params["lfc1_b"],
                        params["bn1_g"], params["bn1_b"],
                        params["bn1_m"], params["bn1_v"])
    y = conv1x1_bn_relu(y, params["lfc2_w"], params["lfc2_b"],
                        params["bn2_g"], params["bn2_b"],
                        params["bn2_m"], params["bn2_v"])
    g = jnp.mean(y, axis=(2, 3))                           # (B, 64)
    return jnp.maximum(g @ params["fc_w"].T + params["fc_b"][None, :], 0.0)


# --------------------------------------------------------------------------
def make_params(key, in_channels):
    ks = jax.random.split(key, 8)
    s = 0.1
    return {
        "conv_w": s * jax.random.normal(ks[0], (64, in_channels, 3, 3), jnp.float32),
        "conv_b": s * jax.random.normal(ks[1], (64,), jnp.float32),
        "lfc1_w": s * jax.random.normal(ks[2], (64, 64, 1, 1), jnp.float32),
        "lfc1_b": s * jax.random.normal(ks[3], (64,), jnp.float32),
        "bn1_g": jnp.ones((64,), jnp.float32),
        "bn1_b": jnp.zeros((64,), jnp.float32),
        "bn1_m": jnp.zeros((64,), jnp.float32),
        "bn1_v": jnp.ones((64,), jnp.float32),
        "lfc2_w": s * jax.random.normal(ks[4], (64, 64, 1, 1), jnp.float32),
        "lfc2_b": s * jax.random.normal(ks[5], (64,), jnp.float32),
        "bn2_g": jnp.ones((64,), jnp.float32),
        "bn2_b": jnp.zeros((64,), jnp.float32),
        "bn2_m": jnp.zeros((64,), jnp.float32),
        "bn2_v": jnp.ones((64,), jnp.float32),
        "fc_w": s * jax.random.normal(ks[6], (512, 64), jnp.float32),
        "fc_b": s * jax.random.normal(ks[7], (512,), jnp.float32),
    }


if __name__ == "__main__":
    key = jax.random.PRNGKey(0)
    k_x, k_p = jax.random.split(key)

    B, C, H, W = 2, 4, 16, 16
    x = jax.random.normal(k_x, (B, C, H, W), jnp.float32)
    params = make_params(k_p, C)

    out = jax.block_until_ready(multi_view_backbone(x, params))
    ref = jax.block_until_ready(reference(x, params))

    assert out.shape == (B, 512), out.shape
    # bf16 MXU inputs with f32 accumulation -> compare at bf16 tolerance.
    assert jnp.allclose(out, ref, atol=5e-2, rtol=5e-2), \
        float(jnp.max(jnp.abs(out - ref)))
    print("KERNEL_OK")
</pallas_src>

<mosaic_0001>
module attributes {stable_mosaic.version = 11 : i64} {
  func.func @backbone_kernel(%arg0: i32, %arg1: memref<128x40xbf16, #tpu.memory_space<vmem>>, %arg2: memref<40x64xbf16, #tpu.memory_space<vmem>>, %arg3: memref<64x64xbf16, #tpu.memory_space<vmem>>, %arg4: memref<1x64xf32, #tpu.memory_space<vmem>>, %arg5: memref<64x512xbf16, #tpu.memory_space<vmem>>, %arg6: memref<1x512xf32, #tpu.memory_space<vmem>>, %arg7: memref<2x512xf32, #tpu.memory_space<vmem>>) attributes {dimension_semantics = [#tpu.dimension_semantics<parallel>], iteration_bounds = array<i64: 1>, scalar_prefetch = 0 : i64, scratch_operands = 0 : i64, tpu.core_type = #tpu.core_type<tc>, window_params = [{transform_indices = @transform_0, window_bounds = array<i64: 128, 40>}, {pipeline_mode = #tpu.pipeline_mode<synchronous>, transform_indices = @transform_1, window_bounds = array<i64: 40, 64>}, {pipeline_mode = #tpu.pipeline_mode<synchronous>, transform_indices = @transform_2, window_bounds = array<i64: 64, 64>}, {pipeline_mode = #tpu.pipeline_mode<synchronous>, transform_indices = @transform_3, window_bounds = array<i64: 1, 64>}, {pipeline_mode = #tpu.pipeline_mode<synchronous>, transform_indices = @transform_4, window_bounds = array<i64: 64, 512>}, {pipeline_mode = #tpu.pipeline_mode<synchronous>, transform_indices = @transform_5, window_bounds = array<i64: 1, 512>}, {transform_indices = @transform_6, window_bounds = array<i64: 2, 512>}]} {
    %c0 = arith.constant 0 : index
    %c0_0 = arith.constant 0 : index
    %0 = vector.load %arg1[%c0, %c0_0] : memref<128x40xbf16, #tpu.memory_space<vmem>>, vector<128x40xbf16>
    %c0_1 = arith.constant 0 : index
    %c0_2 = arith.constant 0 : index
    %1 = vector.load %arg2[%c0_1, %c0_2] : memref<40x64xbf16, #tpu.memory_space<vmem>>, vector<40x64xbf16>
    %cst = arith.constant dense<0.000000e+00> : vector<128x64xf32>
    %2 = tpu.matmul %0, %1, %cst {dimension_numbers = #tpu.dot_dimension_numbers<[1], [0], [0], [1], [0, 0, 1, 1], [], []>} : vector<128x40xbf16>, vector<40x64xbf16>, vector<128x64xf32> -> vector<128x64xf32>
    %cst_3 = arith.constant 0.000000e+00 : f32
    %3 = vector.broadcast %cst_3 : f32 to vector<128x64xf32>
    %4 = arith.maximumf %2, %3 : vector<128x64xf32>
    %5 = arith.truncf %4 : vector<128x64xf32> to vector<128x64xbf16>
    %c0_4 = arith.constant 0 : index
    %c0_5 = arith.constant 0 : index
    %6 = vector.load %arg3[%c0_4, %c0_5] : memref<64x64xbf16, #tpu.memory_space<vmem>>, vector<64x64xbf16>
    %cst_6 = arith.constant dense<0.000000e+00> : vector<128x64xf32>
    %7 = tpu.matmul %5, %6, %cst_6 {dimension_numbers = #tpu.dot_dimension_numbers<[1], [0], [0], [1], [0, 0, 1, 1], [], []>} : vector<128x64xbf16>, vector<64x64xbf16>, vector<128x64xf32> -> vector<128x64xf32>
    %c0_7 = arith.constant 0 : index
    %c0_8 = arith.constant 0 : index
    %8 = vector.load %arg4[%c0_7, %c0_8] : memref<1x64xf32, #tpu.memory_space<vmem>>, vector<1x64xf32>
    %9 = vector.broadcast %8 : vector<1x64xf32> to vector<128x64xf32>
    %10 = arith.addf %7, %9 : vector<128x64xf32>
    %cst_9 = arith.constant 0.000000e+00 : f32
    %11 = vector.broadcast %cst_9 : f32 to vector<128x64xf32>
    %12 = arith.maximumf %10, %11 : vector<128x64xf32>
    %13 = vector.shape_cast %12 : vector<128x64xf32> to vector<2x64x64xf32>
    %cst_10 = arith.constant dense<0.000000e+00> : vector<2x64xf32>
    %14 = vector.multi_reduction <add>, %13, %cst_10 [1] : vector<2x64x64xf32> to vector<2x64xf32>
    %15 = arith.truncf %14 : vector<2x64xf32> to vector<2x64xbf16>
    %c0_11 = arith.constant 0 : index
    %c0_12 = arith.constant 0 : index
    %16 = vector.load %arg5[%c0_11, %c0_12] : memref<64x512xbf16, #tpu.memory_space<vmem>>, vector<64x512xbf16>
    %cst_13 = arith.constant dense<0.000000e+00> : vector<2x512xf32>
    %17 = tpu.matmul %15, %16, %cst_13 {dimension_numbers = #tpu.dot_dimension_numbers<[1], [0], [0], [1], [0, 0, 1, 1], [], []>} : vector<2x64xbf16>, vector<64x512xbf16>, vector<2x512xf32> -> vector<2x512xf32>
    %c0_14 = arith.constant 0 : index
    %c0_15 = arith.constant 0 : index
    %18 = vector.load %arg6[%c0_14, %c0_15] : memref<1x512xf32, #tpu.memory_space<vmem>>, vector<1x512xf32>
    %19 = vector.broadcast %18 : vector<1x512xf32> to vector<2x512xf32>
    %20 = arith.addf %17, %19 : vector<2x512xf32>
    %cst_16 = arith.constant 0.000000e+00 : f32
    %21 = vector.broadcast %cst_16 : f32 to vector<2x512xf32>
    %22 = arith.maximumf %20, %21 : vector<2x512xf32>
    %c0_17 = arith.constant 0 : index
    %c0_18 = arith.constant 0 : index
    %23 = vector.load %arg7[%c0_17, %c0_18] : memref<2x512xf32, #tpu.memory_space<vmem>>, vector<2x512xf32>
    tpu.vector_store %arg7[%c0_17, %c0_18], %22 {strides = array<i32>} : memref<2x512xf32, #tpu.memory_space<vmem>>, vector<2x512xf32>,
    return
  }
  func.func @transform_0(%arg0: i32) -> (i32, i32) {
    %c0_i32 = arith.constant 0 : i32
    %c0_i32_0 = arith.constant 0 : i32
    return %arg0, %c0_i32 : i32, i32
  }
  func.func @transform_1(%arg0: i32) -> (i32, i32) {
    %c0_i32 = arith.constant 0 : i32
    %c0_i32_0 = arith.constant 0 : i32
    %c0_i32_1 = arith.constant 0 : i32
    return %c0_i32, %c0_i32_0 : i32, i32
  }
  func.func @transform_2(%arg0: i32) -> (i32, i32) {
    %c0_i32 = arith.constant 0 : i32
    %c0_i32_0 = arith.constant 0 : i32
    %c0_i32_1 = arith.constant 0 : i32
    return %c0_i32, %c0_i32_0 : i32, i32
  }
  func.func @transform_3(%arg0: i32) -> (i32, i32) {
    %c0_i32 = arith.constant 0 : i32
    %c0_i32_0 = arith.constant 0 : i32
    %c0_i32_1 = arith.constant 0 : i32
    return %c0_i32, %c0_i32_0 : i32, i32
  }
  func.func @transform_4(%arg0: i32) -> (i32, i32) {
    %c0_i32 = arith.constant 0 : i32
    %c0_i32_0 = arith.constant 0 : i32
    %c0_i32_1 = arith.constant 0 : i32
    return %c0_i32, %c0_i32_0 : i32, i32
  }
  func.func @transform_5(%arg0: i32) -> (i32, i32) {
    %c0_i32 = arith.constant 0 : i32
    %c0_i32_0 = arith.constant 0 : i32
    %c0_i32_1 = arith.constant 0 : i32
    return %c0_i32, %c0_i32_0 : i32, i32
  }
  func.func @transform_6(%arg0: i32) -> (i32, i32) {
    %c0_i32 = arith.constant 0 : i32
    %c0_i32_0 = arith.constant 0 : i32
    return %arg0, %c0_i32 : i32, i32
  }
}

</mosaic_0001>

<llo_original>
// kernel: tpu_custom_call.1
$region0: #{tpu_custom_call.1}
  #allocation0 [shape = 'u32[]', space=smem, size = 0x4, offset = 0x4, fixed_abs, tag = 'smem constant byte address 0x4 - core index']
  #allocation1 [shape = 'u32[72,128]{1,0:T(1,128)}', space=vmem, size = 0x9000, scoped, tag = 'internal scratch']
  %s0 = inlined_call_operand.vmem [shape: bf16[128,40], index: 0, kind: input, shape index: {}]
  %s1 = inlined_call_operand.vmem [shape: bf16[40,64], index: 1, kind: input, shape index: {}]
  %s2 = inlined_call_operand.vmem [shape: bf16[64,64], index: 2, kind: input, shape index: {}]
  %s3 = inlined_call_operand.vmem [shape: f32[1,64], index: 3, kind: input, shape index: {}]
  %s4 = inlined_call_operand.hbm [shape: bf16[64,512], index: 4, kind: input, shape index: {}]
  %s5 = inlined_call_operand.vmem [shape: f32[1,512], index: 5, kind: input, shape index: {}]
  %s6 = inlined_call_operand.hbm [shape: f32[2,512], index: 6, kind: output, shape index: {}]
  %s7 = sld [smem:[#allocation0]]
  $region38: #{tpu_custom_call.1} parent=0
    _
  %s9 = ssub.s32 1, %s7
  %s10 = scalar_select 0, %s9, %s7
  $region1: #{tpu_custom_call.1} parent=0
    #allocation2 [shape = 'u8[65536]{0}', space=vmem, size = 0x10000, scoped, tag = 'input window, operand 4, single buffered']
    #allocation3 [shape = 's32[1]{0}', space=sflag, size = 0x4, scoped, tag = 'scoped memory for tpu_custom_call.1']
    #allocation4 [shape = 's32[1]{0}', space=sflag, size = 0x4, scoped, tag = 'scoped memory for tpu_custom_call.1']
    #allocation5 [shape = 'u8[4096]{0}', space=vmem, size = 0x1000, scoped, tag = 'output window, operand 0, single buffered']
    %11 = vsyncpa [#allocation3], 0
    %12 = vsyncpa [#allocation4], 0
    // Predicated region
    $region2: #{tpu_custom_call.1} parent=1 // pred_check
      _
    $region3: #{tpu_custom_call.1} parent=1 // pred_check_branch
      %14 = sbr.rel (0) target = $region5
    $region4: #{tpu_custom_call.1} parent=1 // pred_region
      _
    $region5: #{tpu_custom_call.1} parent=1 // pred_fallthru
      _
    // Predicated region
    $region6: #{tpu_custom_call.1} parent=1 // pred_check
      _
    $region7: #{tpu_custom_call.1} parent=1 // pred_check_branch
      %16 = sbr.rel (0) target = $region9
    $region8: #{tpu_custom_call.1} parent=1 // pred_region
      _
    $region9: #{tpu_custom_call.1} parent=1 // pred_fallthru
      _
    // Predicated region
    $region10: #{tpu_custom_call.1} parent=1 // pred_check
      _
    $region11: #{tpu_custom_call.1} parent=1 // pred_check_branch
      %18 = sbr.rel (0) target = $region13
    $region12: #{tpu_custom_call.1} parent=1 // pred_region
      _
    $region13: #{tpu_custom_call.1} parent=1 // pred_fallthru
      _
    // Predicated region
    $region14: #{tpu_custom_call.1} parent=1 // pred_check
      _
    $region15: #{tpu_custom_call.1} parent=1 // pred_check_branch
      %20 = sbr.rel (0) target = $region17
    $region16: #{tpu_custom_call.1} parent=1 // pred_region
      _
    $region17: #{tpu_custom_call.1} parent=1 // pred_fallthru
      _
    // Predicated region
    $region18: #{tpu_custom_call.1} parent=1 // pred_check
      _
    $region19: #{tpu_custom_call.1} parent=1 // pred_check_branch
      %22 = sbr.rel (0) target = $region21
    $region20: #{tpu_custom_call.1} parent=1 // pred_region
      %24 = vsyncadd [#allocation3], 0
      %s25 = sshll.u32 %s4, 4
      %s26 = int_to_ptr.hbm [resolvable:$true] %s25
      %s27 = sshll.u32 [#allocation2], 4
      %s28 = int_to_ptr.vmem [resolvable:$true] %s27
      %33 = dma.hbm_to_vmem [thread:$0]  %s26, 2048, %s28, [#allocation3], 256, 256, 16
    $region21: #{tpu_custom_call.1} parent=1 // pred_fallthru
      _
    // Predicated region
    $region22: #{tpu_custom_call.1} parent=1 // pred_check
      _
    $region23: #{tpu_custom_call.1} parent=1 // pred_check_branch
      %35 = sbr.rel (0) target = $region25
    $region24: #{tpu_custom_call.1} parent=1 // pred_region
      _
    $region25: #{tpu_custom_call.1} parent=1 // pred_fallthru
      _
    // Predicated region
    $region26: #{tpu_custom_call.1} parent=1 // pred_check
      _
    $region27: #{tpu_custom_call.1} parent=1 // pred_check_branch
      %37 = sbr.rel (0) target = $region29
    $region28: #{tpu_custom_call.1} parent=1 // pred_region
      %39 = dma.done [#allocation3], 2048
    $region29: #{tpu_custom_call.1} parent=1 // pred_fallthru
      _
    %v41 = vld [vmem:[%s0] sm:$0xf]
    %v42 = vld [vmem:[%s0 + $0x4] sm:$0xf]
    %v43 = vld [vmem:[%s0 + $0x8] sm:$0xf]
    %v44 = vld [vmem:[%s0 + $0xc] sm:$0xf]
    %v45 = vld [vmem:[%s0 + $0x10] sm:$0xf]
    %v46 = vld [vmem:[%s0 + $0x14] sm:$0xf]
    %v47 = vld [vmem:[%s0 + $0x18] sm:$0xf]
    %v48 = vld [vmem:[%s0 + $0x1c] sm:$0xf]
    %v49 = vld [vmem:[%s0 + $0x20] sm:$0xf]
    %v50 = vld [vmem:[%s0 + $0x24] sm:$0xf]
    %v51 = vld [vmem:[%s0 + $0x28] sm:$0xf]
    %v52 = vld [vmem:[%s0 + $0x2c] sm:$0xf]
    %v53 = vld [vmem:[%s0 + $0x30] sm:$0xf]
    %v54 = vld [vmem:[%s0 + $0x34] sm:$0xf]
    %v55 = vld [vmem:[%s0 + $0x38] sm:$0xf]
    %v56 = vld [vmem:[%s0 + $0x3c] sm:$0xf]
    %v57 = vld [vmem:[%s1] sm:$0xf]
    %v58 = vld [vmem:[%s1 + $0x4] sm:$0xf]
    %v59 = vld [vmem:[%s1 + $0x8] sm:$0xf]
    %v60 = vld [vmem:[%s1 + $0xc] sm:$0xf]
    %v61 = vld [vmem:[%s1 + $0x10] sm:$0xf]
    %v78 = vunpack.c.l.b16 %v41
    %v79 = vunpack.c.l.b16 %v42
    %v80 = vunpack.c.l.b16 %v43
    %v81 = vunpack.c.l.b16 %v44
    %v82 = vunpack.c.l.b16 %v45
    %v83 = vunpack.c.l.b16 %v46
    %v84 = vunpack.c.l.b16 %v47
    %v85 = vunpack.c.l.b16 %v48
    %v86 = vunpack.c.l.b16 %v49
    %v87 = vunpack.c.l.b16 %v50
    %v88 = vunpack.c.l.b16 %v51
    %v89 = vunpack.c.l.b16 %v52
    %v90 = vunpack.c.l.b16 %v53
    %v91 = vunpack.c.l.b16 %v54
    %v92 = vunpack.c.l.b16 %v55
    %v93 = vunpack.c.l.b16 %v56
    %v94 = vpack.c.b16 %v79, %v78
    %v95 = vpack.c.b16 %v81, %v80
    %v96 = vpack.c.b16 %v83, %v82
    %v97 = vpack.c.b16 %v85, %v84
    %v98 = vpack.c.b16 %v87, %v86
    %v99 = vpack.c.b16 %v89, %v88
    %v100 = vpack.c.b16 %v91, %v90
    %v101 = vpack.c.b16 %v93, %v92
    %v107 = vunpack.c.l.b16 %v57
    %v108 = vunpack.c.l.b16 %v58
    %v109 = vunpack.c.l.b16 %v59
    %v110 = vunpack.c.l.b16 %v60
    %v111 = vunpack.c.l.b16 %v61
    %v112 = vpack.c.b16 %v108, %v107
    %v113 = vpack.c.b16 %v110, %v109
    %v114 = vpack.c.b16 %v111, %v111
    %vm117 = vcmask 326656
    %v119 = vsel %vm117, %v94, 0
    %v122 = vsel %vm117, %v95, 0
    %v125 = vsel %vm117, %v96, 0
    %v128 = vsel %vm117, %v97, 0
    %v131 = vsel %vm117, %v98, 0
    %v134 = vsel %vm117, %v99, 0
    %v137 = vsel %vm117, %v100, 0
    %v140 = vsel %vm117, %v101, 0
    %vm142 = vcmask 1043456
    %v144 = vsel %vm142, %v114, 0
    %146 = vmatpush.bf16.msra.mxu0 0
    %147 = vmatpush.bf16.msra.mxu0 0
    %148 = vmatpush.bf16.msra.mxu0 0
    %149 = vmatpush.bf16.msra.mxu0 0
    %150 = vmatpush.bf16.msra.mxu0 0
    %151 = vmatpush.bf16.msra.mxu0 %v144
    %152 = vmatpush.bf16.msra.mxu0 %v113
    %153 = vmatpush.bf16.msra.mxu0 %v112
    %154 = vmatmul.bf16.gmra.mxu0 %v119
    %v155 = vpop.f32.mrf.mxu0
    %v156 = vadd.f32 0.0, %v155
    %v157 = vpop.f32.mrf.mxu0
    %v158 = vadd.f32 0.0, %v157
    %159 = vmatmul.bf16.gmra.mxu0 %v122
    %v160 = vpop.f32.mrf.mxu0
    %v161 = vadd.f32 0.0, %v160
    %v162 = vpop.f32.mrf.mxu0
    %v163 = vadd.f32 0.0, %v162
    %164 = vmatmul.bf16.gmra.mxu0 %v125
    %v165 = vpop.f32.mrf.mxu0
    %v166 = vadd.f32 0.0, %v165
    %v167 = vpop.f32.mrf.mxu0
    %v168 = vadd.f32 0.0, %v167
    %169 = vmatmul.bf16.gmra.mxu0 %v128
    %v170 = vpop.f32.mrf.mxu0
    %v171 = vadd.f32 0.0, %v170
    %v172 = vpop.f32.mrf.mxu0
    %v173 = vadd.f32 0.0, %v172
    %174 = vmatmul.bf16.gmra.mxu0 %v131
    %v175 = vpop.f32.mrf.mxu0
    %v176 = vadd.f32 0.0, %v175
    %v177 = vpop.f32.mrf.mxu0
    %v178 = vadd.f32 0.0, %v177
    %179 = vmatmul.bf16.gmra.mxu0 %v134
    %v180 = vpop.f32.mrf.mxu0
    %v181 = vadd.f32 0.0, %v180
    %v182 = vpop.f32.mrf.mxu0
    %v183 = vadd.f32 0.0, %v182
    %184 = vmatmul.bf16.gmra.mxu0 %v137
    %v185 = vpop.f32.mrf.mxu0
    %v186 = vadd.f32 0.0, %v185
    %v187 = vpop.f32.mrf.mxu0
    %v188 = vadd.f32 0.0, %v187
    %189 = vmatmul.bf16.gmra.mxu0 %v140
    %v190 = vpop.f32.mrf.mxu0
    %v191 = vadd.f32 0.0, %v190
    %v192 = vpop.f32.mrf.mxu0
    %v193 = vadd.f32 0.0, %v192
    %194 = vdwg.mxu0
    %v195 = vmax.f32 %v156, 0.0
    %v196 = vmax.f32 %v158, 0.0
    %v197 = vmax.f32 %v161, 0.0
    %v198 = vmax.f32 %v163, 0.0
    %v199 = vmax.f32 %v166, 0.0
    %v200 = vmax.f32 %v168, 0.0
    %v201 = vmax.f32 %v171, 0.0
    %v202 = vmax.f32 %v173, 0.0
    %v203 = vmax.f32 %v176, 0.0
    %v204 = vmax.f32 %v178, 0.0
    %v205 = vmax.f32 %v181, 0.0
    %v206 = vmax.f32 %v183, 0.0
    %v207 = vmax.f32 %v186, 0.0
    %v208 = vmax.f32 %v188, 0.0
    %v209 = vmax.f32 %v191, 0.0
    %v210 = vmax.f32 %v193, 0.0
    %v211 = vpack.c.bf16 %v196, %v195
    %v212 = vpack.c.bf16 %v198, %v197
    %v213 = vpack.c.bf16 %v200, %v199
    %v214 = vpack.c.bf16 %v202, %v201
    %v215 = vpack.c.bf16 %v204, %v203
    %v216 = vpack.c.bf16 %v206, %v205
    %v217 = vpack.c.bf16 %v208, %v207
    %v218 = vpack.c.bf16 %v210, %v209
    %v219 = vld [vmem:[%s2] sm:$0xf]
    %v220 = vld [vmem:[%s2 + $0x4] sm:$0xf]
    %v221 = vld [vmem:[%s2 + $0x8] sm:$0xf]
    %v222 = vld [vmem:[%s2 + $0xc] sm:$0xf]
    %v223 = vld [vmem:[%s2 + $0x10] sm:$0xf]
    %v224 = vld [vmem:[%s2 + $0x14] sm:$0xf]
    %v225 = vld [vmem:[%s2 + $0x18] sm:$0xf]
    %v226 = vld [vmem:[%s2 + $0x1c] sm:$0xf]
    %v227 = vld [vmem:[%s3] sm:$0x1]
    %v229 = vperm.slane %v227, 0
    %v239 = vunpack.c.l.b16 %v219
    %v240 = vunpack.c.l.b16 %v220
    %v241 = vunpack.c.l.b16 %v221
    %v242 = vunpack.c.l.b16 %v222
    %v243 = vunpack.c.l.b16 %v223
    %v244 = vunpack.c.l.b16 %v224
    %v245 = vunpack.c.l.b16 %v225
    %v246 = vunpack.c.l.b16 %v226
    %v247 = vpack.c.b16 %v240, %v239
    %v248 = vpack.c.b16 %v242, %v241
    %v249 = vpack.c.b16 %v244, %v243
    %v250 = vpack.c.b16 %v246, %v245
    %vm255 = vcmask 523264
    %v257 = vsel %vm255, %v211, 0
    %v260 = vsel %vm255, %v212, 0
    %v263 = vsel %vm255, %v213, 0
    %v266 = vsel %vm255, %v214, 0
    %v269 = vsel %vm255, %v215, 0
    %v272 = vsel %vm255, %v216, 0
    %v275 = vsel %vm255, %v217, 0
    %v278 = vsel %vm255, %v218, 0
    %280 = vmatpush.bf16.msra.mxu0 0
    %281 = vmatpush.bf16.msra.mxu0 0
    %282 = vmatpush.bf16.msra.mxu0 0
    %283 = vmatpush.bf16.msra.mxu0 0
    %284 = vmatpush.bf16.msra.mxu0 %v250
    %285 = vmatpush.bf16.msra.mxu0 %v249
    %286 = vmatpush.bf16.msra.mxu0 %v248
    %287 = vmatpush.bf16.msra.mxu0 %v247
    %288 = vmatmul.bf16.gmra.mxu0 %v257
    %v289 = vpop.f32.mrf.mxu0
    %v290 = vadd.f32 %v229, %v289
    %v291 = vpop.f32.mrf.mxu0
    %v292 = vadd.f32 %v229, %v291
    %293 = vmatmul.bf16.gmra.mxu0 %v260
    %v294 = vpop.f32.mrf.mxu0
    %v295 = vadd.f32 %v229, %v294
    %v296 = vpop.f32.mrf.mxu0
    %v297 = vadd.f32 %v229, %v296
    %298 = vmatmul.bf16.gmra.mxu0 %v263
    %v299 = vpop.f32.mrf.mxu0
    %v300 = vadd.f32 %v229, %v299
    %v301 = vpop.f32.mrf.mxu0
    %v302 = vadd.f32 %v229, %v301
    %303 = vmatmul.bf16.gmra.mxu0 %v266
    %v304 = vpop.f32.mrf.mxu0
    %v305 = vadd.f32 %v229, %v304
    %v306 = vpop.f32.mrf.mxu0
    %v307 = vadd.f32 %v229, %v306
    %308 = vmatmul.bf16.gmra.mxu0 %v269
    %v309 = vpop.f32.mrf.mxu0
    %v310 = vadd.f32 %v229, %v309
    %v311 = vpop.f32.mrf.mxu0
    %v312 = vadd.f32 %v229, %v311
    %313 = vmatmul.bf16.gmra.mxu0 %v272
    %v314 = vpop.f32.mrf.mxu0
    %v315 = vadd.f32 %v229, %v314
    %v316 = vpop.f32.mrf.mxu0
    %v317 = vadd.f32 %v229, %v316
    %318 = vmatmul.bf16.gmra.mxu0 %v275
    %v319 = vpop.f32.mrf.mxu0
    %v320 = vadd.f32 %v229, %v319
    %v321 = vpop.f32.mrf.mxu0
    %v322 = vadd.f32 %v229, %v321
    %323 = vmatmul.bf16.gmra.mxu0 %v278
    %v324 = vpop.f32.mrf.mxu0
    %v325 = vadd.f32 %v229, %v324
    %v326 = vpop.f32.mrf.mxu0
    %v327 = vadd.f32 %v229, %v326
    %328 = vdwg.mxu0
    %v329 = vmax.f32 %v290, 0.0
    %v330 = vmax.f32 %v292, 0.0
    %v331 = vmax.f32 %v295, 0.0
    %v332 = vmax.f32 %v297, 0.0
    %v333 = vmax.f32 %v300, 0.0
    %v334 = vmax.f32 %v302, 0.0
    %v335 = vmax.f32 %v305, 0.0
    %v336 = vmax.f32 %v307, 0.0
    %v337 = vmax.f32 %v310, 0.0
    %v338 = vmax.f32 %v312, 0.0
    %v339 = vmax.f32 %v315, 0.0
    %v340 = vmax.f32 %v317, 0.0
    %v341 = vmax.f32 %v320, 0.0
    %v342 = vmax.f32 %v322, 0.0
    %v343 = vmax.f32 %v325, 0.0
    %v344 = vmax.f32 %v327, 0.0
    %v345 = vsel %vm255, %v329, 0.0
    %v346 = vsel %vm255, %v330, 0.0
    %v347 = vadd.f32 %v345, %v346
    %v348 = vsel %vm255, %v331, 0.0
    %v349 = vadd.f32 %v347, %v348
    %v350 = vsel %vm255, %v332, 0.0
    %v351 = vadd.f32 %v349, %v350
    %v352 = vsel %vm255, %v333, 0.0
    %v353 = vadd.f32 %v351, %v352
    %v354 = vsel %vm255, %v334, 0.0
    %v355 = vadd.f32 %v353, %v354
    %v356 = vsel %vm255, %v335, 0.0
    %v357 = vadd.f32 %v355, %v356
    %v358 = vsel %vm255, %v336, 0.0
    %v359 = vadd.f32 %v357, %v358
    %v360 = vrot.slane %v359, 4
    %v361 = vadd.f32 %v359, %v360
    %v362 = vrot.slane %v361, 2
    %v363 = vadd.f32 %v361, %v362
    %v364 = vrot.slane %v363, 1
    %v365 = vadd.f32 %v363, %v364
    %v366 = vsel %vm255, %v337, 0.0
    %v367 = vsel %vm255, %v338, 0.0
    %v368 = vadd.f32 %v366, %v367
    %v369 = vsel %vm255, %v339, 0.0
    %v370 = vadd.f32 %v368, %v369
    %v371 = vsel %vm255, %v340, 0.0
    %v372 = vadd.f32 %v370, %v371
    %v373 = vsel %vm255, %v341, 0.0
    %v374 = vadd.f32 %v372, %v373
    %v375 = vsel %vm255, %v342, 0.0
    %v376 = vadd.f32 %v374, %v375
    %v377 = vsel %vm255, %v343, 0.0
    %v378 = vadd.f32 %v376, %v377
    %v379 = vsel %vm255, %v344, 0.0
    %v380 = vadd.f32 %v378, %v379
    %v381 = vrot.slane %v380, 4
    %v382 = vadd.f32 %v380, %v381
    %v383 = vrot.slane %v382, 2
    %v384 = vadd.f32 %v382, %v383
    %v385 = vrot.slane %v384, 1
    %v386 = vadd.f32 %v384, %v385
    %v387 = vpack.c.bf16 %v365, %v365
    %v388 = vpack.c.bf16 %v386, %v386
    %v389 = vld [vmem:[#allocation2] sm:$0xff]
    %v390 = vld [vmem:[#allocation2 + $0x8] sm:$0xff]
    %v391 = vld [vmem:[#allocation2 + $0x10] sm:$0xff]
    %v392 = vld [vmem:[#allocation2 + $0x18] sm:$0xff]
    %v393 = vld [vmem:[#allocation2 + $0x20] sm:$0xff]
    %v394 = vld [vmem:[#allocation2 + $0x28] sm:$0xff]
    %v395 = vld [vmem:[#allocation2 + $0x30] sm:$0xff]
    %v396 = vld [vmem:[#allocation2 + $0x38] sm:$0xff]
    %v397 = vld [vmem:[#allocation2 + $0x40] sm:$0xff]
    %v398 = vld [vmem:[#allocation2 + $0x48] sm:$0xff]
    %v399 = vld [vmem:[#allocation2 + $0x50] sm:$0xff]
    %v400 = vld [vmem:[#allocation2 + $0x58] sm:$0xff]
    %v401 = vld [vmem:[#allocation2 + $0x60] sm:$0xff]
    %v402 = vld [vmem:[#allocation2 + $0x68] sm:$0xff]
    %v403 = vld [vmem:[#allocation2 + $0x70] sm:$0xff]
    %v404 = vld [vmem:[#allocation2 + $0x78] sm:$0xff]
    %v405 = vld [vmem:[%s5] sm:$0xf]
    %v407 = vperm.slane %v405, 0
    %v408 = vperm.slane %v405, 1
    %v409 = vperm.slane %v405, 2
    %v410 = vperm.slane %v405, 3
    %v417 = vunpack.c.l.b16 %v387
    %v418 = vunpack.c.l.b16 %v388
    %vm419 = vcmask 1041409
    %v420 = vsel %vm419, %v418, %v417
    %v421 = vpack.c.b16 %v420, %v420
    %v438 = vunpack.c.l.b16 %v389
    %v439 = vunpack.c.h.b16 %v389
    %v440 = vunpack.c.l.b16 %v390
    %v441 = vunpack.c.h.b16 %v390
    %v442 = vunpack.c.l.b16 %v391
    %v443 = vunpack.c.h.b16 %v391
    %v444 = vunpack.c.l.b16 %v392
    %v445 = vunpack.c.h.b16 %v392
    %v446 = vunpack.c.l.b16 %v393
    %v447 = vunpack.c.h.b16 %v393
    %v448 = vunpack.c.l.b16 %v394
    %v449 = vunpack.c.h.b16 %v394
    %v450 = vunpack.c.l.b16 %v395
    %v451 = vunpack.c.h.b16 %v395
    %v452 = vunpack.c.l.b16 %v396
    %v453 = vunpack.c.h.b16 %v396
    %v454 = vunpack.c.l.b16 %v397
    %v455 = vunpack.c.h.b16 %v397
    %v456 = vunpack.c.l.b16 %v398
    %v457 = vunpack.c.h.b16 %v398
    %v458 = vunpack.c.l.b16 %v399
    %v459 = vunpack.c.h.b16 %v399
    %v460 = vunpack.c.l.b16 %v400
    %v461 = vunpack.c.h.b16 %v400
    %v462 = vunpack.c.l.b16 %v401
    %v463 = vunpack.c.h.b16 %v401
    %v464 = vunpack.c.l.b16 %v402
    %v465 = vunpack.c.h.b16 %v402
    %v466 = vunpack.c.l.b16 %v403
    %v467 = vunpack.c.h.b16 %v403
    %v468 = vunpack.c.l.b16 %v404
    %v469 = vunpack.c.h.b16 %v404
    %v470 = vpack.c.b16 %v442, %v438
    %v471 = vpack.c.b16 %v443, %v439
    %v472 = vpack.c.b16 %v444, %v440
    %v473 = vpack.c.b16 %v445, %v441
    %v474 = vpack.c.b16 %v450, %v446
    %v475 = vpack.c.b16 %v451, %v447
    %v476 = vpack.c.b16 %v452, %v448
    %v477 = vpack.c.b16 %v453, %v449
    %v478 = vpack.c.b16 %v458, %v454
    %v479 = vpack.c.b16 %v459, %v455
    %v480 = vpack.c.b16 %v460, %v456
    %v481 = vpack.c.b16 %v461, %v457
    %v482 = vpack.c.b16 %v466, %v462
    %v483 = vpack.c.b16 %v467, %v463
    %v484 = vpack.c.b16 %v468, %v464
    %v485 = vpack.c.b16 %v469, %v465
    %v503 = vsel %vm255, %v421, 0
    %505 = vmatpush.bf16.msra.mxu0 0
    %506 = vmatpush.bf16.msra.mxu0 0
    %507 = vmatpush.bf16.msra.mxu0 0
    %508 = vmatpush.bf16.msra.mxu0 0
    %509 = vmatpush.bf16.msra.mxu0 %v482
    %510 = vmatpush.bf16.msra.mxu0 %v478
    %511 = vmatpush.bf16.msra.mxu0 %v474
    %512 = vmatpush.bf16.msra.mxu0 %v470
    %513 = vmatmul.bf16.gmra.mxu0 %v503
    %v514 = vpop.f32.mrf.mxu0
    %v515 = vadd.f32 %v407, %v514
    %v516 = vpop.f32.mrf.mxu0
    %517 = vdwg.mxu0
    %518 = vmatpush.bf16.msra.mxu0 0
    %519 = vmatpush.bf16.msra.mxu0 0
    %520 = vmatpush.bf16.msra.mxu0 0
    %521 = vmatpush.bf16.msra.mxu0 0
    %522 = vmatpush.bf16.msra.mxu0 %v483
    %523 = vmatpush.bf16.msra.mxu0 %v479
    %524 = vmatpush.bf16.msra.mxu0 %v475
    %525 = vmatpush.bf16.msra.mxu0 %v471
    %526 = vmatmul.bf16.gmra.mxu0 %v503
    %v527 = vpop.f32.mrf.mxu0
    %v528 = vadd.f32 %v408, %v527
    %v529 = vpop.f32.mrf.mxu0
    %530 = vdwg.mxu0
    %531 = vmatpush.bf16.msra.mxu0 0
    %532 = vmatpush.bf16.msra.mxu0 0
    %533 = vmatpush.bf16.msra.mxu0 0
    %534 = vmatpush.bf16.msra.mxu0 0
    %535 = vmatpush.bf16.msra.mxu0 %v484
    %536 = vmatpush.bf16.msra.mxu0 %v480
    %537 = vmatpush.bf16.msra.mxu0 %v476
    %538 = vmatpush.bf16.msra.mxu0 %v472
    %539 = vmatmul.bf16.gmra.mxu0 %v503
    %v540 = vpop.f32.mrf.mxu0
    %v541 = vadd.f32 %v409, %v540
    %v542 = vpop.f32.mrf.mxu0
    %543 = vdwg.mxu0
    %544 = vmatpush.bf16.msra.mxu0 0
    %545 = vmatpush.bf16.msra.mxu0 0
    %546 = vmatpush.bf16.msra.mxu0 0
    %547 = vmatpush.bf16.msra.mxu0 0
    %548 = vmatpush.bf16.msra.mxu0 %v485
    %549 = vmatpush.bf16.msra.mxu0 %v481
    %550 = vmatpush.bf16.msra.mxu0 %v477
    %551 = vmatpush.bf16.msra.mxu0 %v473
    %552 = vmatmul.bf16.gmra.mxu0 %v503
    %v553 = vpop.f32.mrf.mxu0
    %v554 = vadd.f32 %v410, %v553
    %v555 = vpop.f32.mrf.mxu0
    %556 = vdwg.mxu0
    %v557 = vmax.f32 %v515, 0.0
    %v558 = vmax.f32 %v528, 0.0
    %v559 = vmax.f32 %v541, 0.0
    %v560 = vmax.f32 %v554, 0.0
    %v565 = vrot.slane %v558, 6
    %v566 = vrot.slane %v559, 4
    %v567 = vrot.slane %v560, 2
    %vm568 = vcmask 1041408
    %v569 = vsel %vm568, %v557, %v565
    %vm570 = vcmask 1045508
    %v571 = vsel %vm570, %v566, %v567
    %v572 = vsel %vm142, %v569, %v571
    %574 = vst [vmem:[#allocation5] sm:$0xff] %v572
    // Predicated region
    $region30: #{tpu_custom_call.1} parent=1 // pred_check
      _
    $region31: #{tpu_custom_call.1} parent=1 // pred_check_branch
      %576 = sbr.rel (0) target = $region33
    $region32: #{tpu_custom_call.1} parent=1 // pred_region
      %578 = vsyncadd [#allocation4], 0
      %s580 = sshll.u32 [#allocation5], 4
      %s581 = int_to_ptr.vmem [resolvable:$true] %s580
      %s582 = sshll.u32 %s6, 4
      %s583 = int_to_ptr.hbm [resolvable:$true] %s582
      %585 = dma.vmem_to_hbm [thread:$0]  %s581, 128, %s583, [#allocation4]
    $region33: #{tpu_custom_call.1} parent=1 // pred_fallthru
      _
    // Predicated region
    $region34: #{tpu_custom_call.1} parent=1 // pred_check
      _
    $region35: #{tpu_custom_call.1} parent=1 // pred_check_branch
      %587 = sbr.rel (0) target = $region37
    $region36: #{tpu_custom_call.1} parent=1 // pred_region
      %589 = dma.done [#allocation4], 128
    $region37: #{tpu_custom_call.1} parent=1 // pred_fallthru
      _
    %590 = vsyncpa [#allocation3], 1
    %591 = vsyncpa [#allocation4], 1

</llo_original>
